<compile_context>
chip_gen: v5e
topology: v5e:2x2
jax: 0.10.0
libtpu: 0.0.40
codegen_flags: <defaults>
</compile_context>

<pallas_src>
import functools
import math

import jax
import jax.numpy as jnp
from jax.experimental import pallas as pl
from jax.experimental.pallas import tpu as pltpu


def _pick_tile(n, max_tile=1024):
    """Full spatial extent if small enough, else the largest 128-multiple
    divisor of n that is <= max_tile (falls back to a single tile)."""
    if n <= max_tile:
        return n
    t = (max_tile // 128) * 128
    while t >= 128:
        if n % t == 0:
            return t
        t -= 128
    # TODO(synk): pad the spatial axis for resolutions with no aligned divisor.
    return n


def _cross_attention_kernel(x_ref, y_ref, wqkv_ref, wo_ref, bo_ref, o_ref,
                            q_scr, k_scr, v_scr, *,
                            scale, heads, dh, tile_x, n_tiles, sub_max):
    # x_ref   : (1, C, n_x)      one batch element, channels x flattened spatial
    # y_ref   : (1, C, n_y)
    # wqkv_ref: (3*hidden, C)    to_qkv 1x1-conv weight (all heads stacked)
    # wo_ref  : (C_out, hidden)  to_out 1x1-conv weight
    # bo_ref  : (C_out, 1)       to_out bias
    # o_ref   : (1, C_out, tile_x)
    # q_scr   : (hidden, n_x) f32  scale * l2norm(q) for the whole batch element
    # k_scr   : (hidden, n_y) f32  l2norm(k)
    # v_scr   : (hidden, n_y)      v (input dtype)
    t = pl.program_id(1)
    hidden = heads * dh
    n_y = k_scr.shape[-1]

    # ---- per-batch-element setup: only on the first query tile -------------
    @pl.when(t == 0)
    def _init():
        x = x_ref[0]                                   # (C, n_x)
        y = y_ref[0]                                   # (C, n_y)
        w_q = wqkv_ref[pl.ds(0, hidden), :]            # (hidden, C)
        w_kv = wqkv_ref[pl.ds(hidden, 2 * hidden), :]  # (2*hidden, C)

        # 1x1 conv == channel matmul; all heads stacked -> one MXU call per input.
        q = jnp.dot(w_q, x, preferred_element_type=jnp.float32)     # (hidden, n_x)
        kv = jnp.dot(w_kv, y, preferred_element_type=jnp.float32)   # (2*hidden, n_y)
        k = kv[:hidden]
        v = kv[hidden:]

        # F.normalize(t, dim=-1): last axis is the flattened spatial axis.
        # rsqrt(max(ss, eps^2)) == 1 / max(||t||, eps), torch eps = 1e-12.
        eps2 = 1e-24
        q_inv = jax.lax.rsqrt(jnp.maximum(jnp.sum(q * q, -1, keepdims=True), eps2))
        k_inv = jax.lax.rsqrt(jnp.maximum(jnp.sum(k * k, -1, keepdims=True), eps2))
        # Fold the attention scale into q (hidden muls, not n_x*n_y on sim).
        q_scr[...] = q * (q_inv * scale)
        k_scr[...] = k * k_inv
        v_scr[...] = v.astype(v_scr.dtype)

    # ---- per query tile: attention + to_out --------------------------------
    if n_tiles == 1:
        col = 0
    else:
        col = pl.multiple_of(t * tile_x, tile_x)

    bias = bo_ref[...].astype(jnp.float32)             # (C_out, 1)
    ones_row = jnp.ones((1, n_y), jnp.float32)

    acc = None
    for h in range(heads):                              # static, heads=1 default
        r = h * dh
        q_t = q_scr[pl.ds(r, dh), pl.ds(col, tile_x)]   # (dh, T) f32 (scaled, normed)
        k_h = k_scr[pl.ds(r, dh), :]                    # (dh, n_y)
        v_h = v_scr[pl.ds(r, dh), :]                    # (dh, n_y)

        # sim[i, j] = scale * <q_norm[:, i], k_norm[:, j]>          -> (T, n_y)
        sim = jax.lax.dot_general(q_t, k_h, (((0,), (0,)), ((), ())),
                                  preferred_element_type=jnp.float32)

        # Row-max kept unless scale*dim_head provably cannot overflow exp():
        # l2norm is over the spatial axis, so |sim| <= scale*dim_head, NOT scale.
        if sub_max:
            sim = sim - jnp.max(sim, axis=-1, keepdims=True)
        p = jnp.exp(sim)                                # (T, n_y)

        # Deferred softmax normalization: denominators directly in (1, T) lane
        # layout via an M=1 matmul (no divide over the full attention matrix,
        # no sublane->lane transpose of a reduction result).
        denom = jax.lax.dot_general(ones_row, p, (((1,), (1,)), ((), ())),
                                    preferred_element_type=jnp.float32)  # (1, T)
        inv = pl.reciprocal(denom, approx=True)

        # out_t[d, i] = sum_j v[d, j] * p[i, j]                      -> (dh, T)
        pv = jax.lax.dot_general(v_h, p.astype(v_h.dtype),
                                 (((1,), (1,)), ((), ())),
                                 preferred_element_type=jnp.float32)

        # to_out contribution of this head: (C_out, dh) @ (dh, T); the softmax
        # normalization is a per-query-column scale, so it commutes with the
        # channel matmul and is applied afterwards (C_out*T muls).
        wo_h = wo_ref[:, pl.ds(r, dh)]
        contrib = jnp.dot(wo_h, pv.astype(wo_h.dtype),
                          preferred_element_type=jnp.float32) * inv
        acc = contrib if acc is None else acc + contrib

    o_ref[0] = (acc + bias).astype(o_ref.dtype)


def cross_attention(x, y, w_qkv, w_out, b_out, *, heads=1, scale=10.0,
                    max_tile=1024):
    """x: (B, C, H, W), y: (B, C, Hy, Wy) in NCHW.
    w_qkv: (3*hidden, C)  to_qkv 1x1-conv weight (squeezed).
    w_out: (C, hidden), b_out: (C,)  to_out 1x1-conv weight / bias (squeezed).
    Returns (B, C, H, W) matching the PyTorch module."""
    B, C, H, W = x.shape
    By, Cy, Hy, Wy = y.shape
    assert B == By and C == Cy
    hidden = w_qkv.shape[0] // 3
    dh = hidden // heads
    C_out = w_out.shape[0]
    n_x = H * W
    n_y = Hy * Wy

    tile_x = _pick_tile(n_x, max_tile)
    n_tiles = n_x // tile_x

    # Free reshapes of contiguous memory only -- no wrapper transposes.
    x_flat = x.reshape(B, C, n_x)
    y_flat = y.reshape(B, C, n_y)
    bo = b_out.reshape(C_out, 1)

    # Skip the softmax row-max only when exp(scale*dim_head) cannot overflow f32.
    sub_max = (float(scale) * dh) > 80.0

    kernel = functools.partial(
        _cross_attention_kernel, scale=float(scale), heads=heads, dh=dh,
        tile_x=tile_x, n_tiles=n_tiles, sub_max=sub_max)

    out_flat = pl.pallas_call(
        kernel,
        out_shape=jax.ShapeDtypeStruct((B, C_out, n_x), x.dtype),
        grid_spec=pltpu.PrefetchScalarGridSpec(
            num_scalar_prefetch=0,
            grid=(B, n_tiles),
            in_specs=[
                # x / y: full spatial extent; block index ignores t, so they
                # stay resident across all query tiles of a batch element.
                pl.BlockSpec((1, C, n_x), lambda b, t: (b, 0, 0)),
                pl.BlockSpec((1, C, n_y), lambda b, t: (b, 0, 0)),
                # Weights / bias: constant index map -> one DMA, grid-resident.
                pl.BlockSpec((3 * hidden, C), lambda b, t: (0, 0)),
                pl.BlockSpec((C_out, hidden), lambda b, t: (0, 0)),
                pl.BlockSpec((C_out, 1), lambda b, t: (0, 0)),
            ],
            out_specs=pl.BlockSpec((1, C_out, tile_x), lambda b, t: (b, 0, t)),
            scratch_shapes=[
                pltpu.VMEM((hidden, n_x), jnp.float32),   # scale * l2norm(q)
                pltpu.VMEM((hidden, n_y), jnp.float32),   # l2norm(k)
                pltpu.VMEM((hidden, n_y), y.dtype),       # v
            ],
        ),
        compiler_params=pltpu.CompilerParams(
            # Batch is megacore-parallel; the query-tile axis must stay
            # sequential: tile 0 fills the per-batch q/k/v scratch.
            dimension_semantics=("parallel", "arbitrary"),
            vmem_limit_bytes=64 * 1024 * 1024,
        ),
    )(x_flat, y_flat, w_qkv, w_out, bo)

    return out_flat.reshape(B, C_out, H, W)


def cross_attention_reference(x, y, w_qkv, w_out, b_out, *, heads=1, scale=10.0):
    """Pure-JAX reference mirroring the PyTorch forward exactly."""
    P = jax.lax.Precision.HIGHEST
    B, C, H, W = x.shape
    _, _, Hy, Wy = y.shape
    hidden = w_qkv.shape[0] // 3
    dh = hidden // heads
    C_out = w_out.shape[0]

    def conv1x1(t, w):
        return jnp.einsum('oc,bchw->bohw', w, t, precision=P)

    qkv_x = conv1x1(x, w_qkv)
    qkv_y = conv1x1(y, w_qkv)
    q_x = qkv_x[:, :hidden]
    k_y = qkv_y[:, hidden:2 * hidden]
    v_y = qkv_y[:, 2 * hidden:]

    def rearr(t):  # 'b (h c) x y -> b h c (x y)'
        b, _, hh, ww = t.shape
        return t.reshape(b, heads, dh, hh * ww)

    q, k, v = rearr(q_x), rearr(k_y), rearr(v_y)

    def l2norm(t):  # F.normalize(t, dim=-1)
        n = jnp.sqrt(jnp.sum(t * t, axis=-1, keepdims=True))
        return t / jnp.maximum(n, 1e-12)

    q, k = l2norm(q), l2norm(k)
    sim = jnp.einsum('bhdi,bhdj->bhij', q, k, precision=P) * scale
    attn = jax.nn.softmax(sim, axis=-1)
    out = jnp.einsum('bhij,bhdj->bhid', attn, v, precision=P)
    out = jnp.transpose(out, (0, 1, 3, 2)).reshape(B, heads * dh, H, W)
    out = jnp.einsum('od,bdhw->bohw', w_out, out, precision=P)
    return out + b_out.reshape(1, C_out, 1, 1)


if __name__ == "__main__":
    key = jax.random.PRNGKey(0)
    k1, k2, k3, k4, k5 = jax.random.split(key, 5)

    B, dim = 2, 4
    heads, dim_head, scale = 1, 32, 10.0
    hidden = heads * dim_head
    Hx = Wx = 16   # x spatial
    Hy = Wy = 8    # y spatial (cross-attention source)

    x = jax.random.normal(k1, (B, dim, Hx, Wx), dtype=jnp.float32)
    y = jax.random.normal(k2, (B, dim, Hy, Wy), dtype=jnp.float32)
    w_qkv = jax.random.normal(k3, (3 * hidden, dim), dtype=jnp.float32) / math.sqrt(dim)
    w_out = jax.random.normal(k4, (dim, hidden), dtype=jnp.float32) / math.sqrt(hidden)
    b_out = 0.1 * jax.random.normal(k5, (dim,), dtype=jnp.float32)

    out = cross_attention(x, y, w_qkv, w_out, b_out, heads=heads, scale=scale)
    out = jax.block_until_ready(out)

    ref = cross_attention_reference(x, y, w_qkv, w_out, b_out, heads=heads, scale=scale)

    assert out.shape == (B, dim, Hx, Wx)
    assert out.dtype == x.dtype
    max_err = jnp.max(jnp.abs(out - ref))
    assert jnp.allclose(out, ref, atol=2e-3, rtol=2e-3), (
        f"mismatch vs reference: max abs err = {max_err}"
    )

    print("KERNEL_OK")
</pallas_src>

<mosaic_0001>
module attributes {stable_mosaic.version = 11 : i64} {
  func.func @_cross_attention_kernel(%arg0: i32, %arg1: i32, %arg2: memref<1x4x256xf32, #tpu.memory_space<vmem>>, %arg3: memref<1x4x64xf32, #tpu.memory_space<vmem>>, %arg4: memref<96x4xf32, #tpu.memory_space<vmem>>, %arg5: memref<4x32xf32, #tpu.memory_space<vmem>>, %arg6: memref<4x1xf32, #tpu.memory_space<vmem>>, %arg7: memref<1x4x256xf32, #tpu.memory_space<vmem>>, %arg8: memref<32x256xf32, #tpu.memory_space<vmem>>, %arg9: memref<32x64xf32, #tpu.memory_space<vmem>>, %arg10: memref<32x64xf32, #tpu.memory_space<vmem>>) attributes {dimension_semantics = [#tpu.dimension_semantics<parallel>, #tpu.dimension_semantics<arbitrary>], iteration_bounds = array<i64: 2, 1>, scalar_prefetch = 0 : i64, scratch_operands = 3 : i64, tpu.core_type = #tpu.core_type<tc>, window_params = [{transform_indices = @transform_0, window_bounds = array<i64: 1, 4, 256>}, {transform_indices = @transform_1, window_bounds = array<i64: 1, 4, 64>}, {pipeline_mode = #tpu.pipeline_mode<synchronous>, transform_indices = @transform_2, window_bounds = array<i64: 96, 4>}, {pipeline_mode = #tpu.pipeline_mode<synchronous>, transform_indices = @transform_3, window_bounds = array<i64: 4, 32>}, {pipeline_mode = #tpu.pipeline_mode<synchronous>, transform_indices = @transform_4, window_bounds = array<i64: 4, 1>}, {transform_indices = @transform_5, window_bounds = array<i64: 1, 4, 256>}]} {
    %c0_i32 = arith.constant 0 : i32
    %0 = arith.cmpi eq, %arg1, %c0_i32 : i32
    %1 = arith.extui %0 : i1 to i32
    %c0_i32_0 = arith.constant 0 : i32
    %2 = arith.cmpi ne, %1, %c0_i32_0 : i32
    scf.if %2 {
      %c0_18 = arith.constant 0 : index
      %c0_19 = arith.constant 0 : index
      %c0_20 = arith.constant 0 : index
      %26 = vector.load %arg2[%c0_18, %c0_19, %c0_20] : memref<1x4x256xf32, #tpu.memory_space<vmem>>, vector<1x4x256xf32>
      %27 = vector.shape_cast %26 : vector<1x4x256xf32> to vector<4x256xf32>
      %c0_21 = arith.constant 0 : index
      %c0_22 = arith.constant 0 : index
      %c0_23 = arith.constant 0 : index
      %28 = vector.load %arg3[%c0_21, %c0_22, %c0_23] : memref<1x4x64xf32, #tpu.memory_space<vmem>>, vector<1x4x64xf32>
      %29 = vector.shape_cast %28 : vector<1x4x64xf32> to vector<4x64xf32>
      %c0_24 = arith.constant 0 : index
      %c0_25 = arith.constant 0 : index
      %30 = vector.load %arg4[%c0_24, %c0_25] : memref<96x4xf32, #tpu.memory_space<vmem>>, vector<32x4xf32>
      %c32 = arith.constant 32 : index
      %c0_26 = arith.constant 0 : index
      %31 = vector.load %arg4[%c32, %c0_26] : memref<96x4xf32, #tpu.memory_space<vmem>>, vector<64x4xf32>
      %cst_27 = arith.constant dense<0.000000e+00> : vector<32x256xf32>
      %32 = tpu.matmul %30, %27, %cst_27 {dimension_numbers = #tpu.dot_dimension_numbers<[1], [0], [0], [1], [0, 0, 1, 1], [], []>} : vector<32x4xf32>, vector<4x256xf32>, vector<32x256xf32> -> vector<32x256xf32>
      %cst_28 = arith.constant dense<0.000000e+00> : vector<64x64xf32>
      %33 = tpu.matmul %31, %29, %cst_28 {dimension_numbers = #tpu.dot_dimension_numbers<[1], [0], [0], [1], [0, 0, 1, 1], [], []>} : vector<64x4xf32>, vector<4x64xf32>, vector<64x64xf32> -> vector<64x64xf32>
      %34 = vector.extract_strided_slice %33 {offsets = [0, 0], sizes = [32, 64], strides = [1, 1]} : vector<64x64xf32> to vector<32x64xf32>
      %35 = vector.extract_strided_slice %33 {offsets = [32, 0], sizes = [32, 64], strides = [1, 1]} : vector<64x64xf32> to vector<32x64xf32>
      %36 = arith.mulf %32, %32 : vector<32x256xf32>
      %cst_29 = arith.constant dense<0.000000e+00> : vector<32xf32>
      %37 = vector.multi_reduction <add>, %36, %cst_29 [1] : vector<32x256xf32> to vector<32xf32>
      %38 = vector.shape_cast %37 : vector<32xf32> to vector<32x1xf32>
      %cst_30 = arith.constant 1.000000e-24 : f32
      %39 = vector.broadcast %cst_30 : f32 to vector<32x1xf32>
      %40 = arith.maximumf %38, %39 : vector<32x1xf32>
      %41 = math.rsqrt %40 : vector<32x1xf32>
      %42 = arith.mulf %34, %34 : vector<32x64xf32>
      %cst_31 = arith.constant dense<0.000000e+00> : vector<32xf32>
      %43 = vector.multi_reduction <add>, %42, %cst_31 [1] : vector<32x64xf32> to vector<32xf32>
      %44 = vector.shape_cast %43 : vector<32xf32> to vector<32x1xf32>
      %cst_32 = arith.constant 1.000000e-24 : f32
      %45 = vector.broadcast %cst_32 : f32 to vector<32x1xf32>
      %46 = arith.maximumf %44, %45 : vector<32x1xf32>
      %47 = math.rsqrt %46 : vector<32x1xf32>
      %cst_33 = arith.constant 1.000000e+01 : f32
      %48 = vector.broadcast %cst_33 : f32 to vector<32x1xf32>
      %49 = arith.mulf %41, %48 : vector<32x1xf32>
      %50 = vector.broadcast %49 : vector<32x1xf32> to vector<32x256xf32>
      %51 = arith.mulf %32, %50 : vector<32x256xf32>
      %c0_34 = arith.constant 0 : index
      %c0_35 = arith.constant 0 : index
      %52 = vector.load %arg8[%c0_34, %c0_35] : memref<32x256xf32, #tpu.memory_space<vmem>>, vector<32x256xf32>
      tpu.vector_store %arg8[%c0_34, %c0_35], %51 {strides = array<i32>} : memref<32x256xf32, #tpu.memory_space<vmem>>, vector<32x256xf32>,
      %53 = vector.broadcast %47 : vector<32x1xf32> to vector<32x64xf32>
      %54 = arith.mulf %34, %53 : vector<32x64xf32>
      %c0_36 = arith.constant 0 : index
      %c0_37 = arith.constant 0 : index
      %55 = vector.load %arg9[%c0_36, %c0_37] : memref<32x64xf32, #tpu.memory_space<vmem>>, vector<32x64xf32>
      tpu.vector_store %arg9[%c0_36, %c0_37], %54 {strides = array<i32>} : memref<32x64xf32, #tpu.memory_space<vmem>>, vector<32x64xf32>,
      %c0_38 = arith.constant 0 : index
      %c0_39 = arith.constant 0 : index
      %56 = vector.load %arg10[%c0_38, %c0_39] : memref<32x64xf32, #tpu.memory_space<vmem>>, vector<32x64xf32>
      tpu.vector_store %arg10[%c0_38, %c0_39], %35 {strides = array<i32>} : memref<32x64xf32, #tpu.memory_space<vmem>>, vector<32x64xf32>,
    } else {
    }
    %c0 = arith.constant 0 : index
    %c0_1 = arith.constant 0 : index
    %3 = vector.load %arg6[%c0, %c0_1] : memref<4x1xf32, #tpu.memory_space<vmem>>, vector<4x1xf32>
    %cst = arith.constant 1.000000e+00 : f32
    %4 = vector.broadcast %cst : f32 to vector<1x64xf32>
    %c0_2 = arith.constant 0 : index
    %c0_3 = arith.constant 0 : index
    %5 = vector.load %arg8[%c0_2, %c0_3] : memref<32x256xf32, #tpu.memory_space<vmem>>, vector<32x256xf32>
    %c0_4 = arith.constant 0 : index
    %c0_5 = arith.constant 0 : index
    %6 = vector.load %arg9[%c0_4, %c0_5] : memref<32x64xf32, #tpu.memory_space<vmem>>, vector<32x64xf32>
    %c0_6 = arith.constant 0 : index
    %c0_7 = arith.constant 0 : index
    %7 = vector.load %arg10[%c0_6, %c0_7] : memref<32x64xf32, #tpu.memory_space<vmem>>, vector<32x64xf32>
    %cst_8 = arith.constant dense<0.000000e+00> : vector<256x64xf32>
    %8 = tpu.matmul %5, %6, %cst_8 {dimension_numbers = #tpu.dot_dimension_numbers<[0], [0], [1], [1], [0, 1, 1, 1], [], []>} : vector<32x256xf32>, vector<32x64xf32>, vector<256x64xf32> -> vector<256x64xf32>
    %cst_9 = arith.constant dense<0xFF800000> : vector<256xf32>
    %9 = vector.multi_reduction <maximumf>, %8, %cst_9 [1] : vector<256x64xf32> to vector<256xf32>
    %10 = vector.shape_cast %9 : vector<256xf32> to vector<256x1xf32>
    %11 = vector.broadcast %10 : vector<256x1xf32> to vector<256x64xf32>
    %12 = arith.subf %8, %11 : vector<256x64xf32>
    %13 = math.exp %12 : vector<256x64xf32>
    %cst_10 = arith.constant dense<0.000000e+00> : vector<1x256xf32>
    %14 = tpu.matmul %4, %13, %cst_10 {dimension_numbers = #tpu.dot_dimension_numbers<[1], [1], [0], [0], [0, 0, 1, 0], [], []>} : vector<1x64xf32>, vector<256x64xf32>, vector<1x256xf32> -> vector<1x256xf32>
    %15 = tpu.reciprocal %14 {approx = true} : vector<1x256xf32> -> vector<1x256xf32>
    %cst_11 = arith.constant dense<0.000000e+00> : vector<32x256xf32>
    %16 = tpu.matmul %7, %13, %cst_11 {dimension_numbers = #tpu.dot_dimension_numbers<[1], [1], [0], [0], [0, 0, 1, 0], [], []>} : vector<32x64xf32>, vector<256x64xf32>, vector<32x256xf32> -> vector<32x256xf32>
    %c0_12 = arith.constant 0 : index
    %c0_13 = arith.constant 0 : index
    %17 = vector.load %arg5[%c0_12, %c0_13] : memref<4x32xf32, #tpu.memory_space<vmem>>, vector<4x32xf32>
    %cst_14 = arith.constant dense<0.000000e+00> : vector<4x256xf32>
    %18 = tpu.matmul %17, %16, %cst_14 {dimension_numbers = #tpu.dot_dimension_numbers<[1], [0], [0], [1], [0, 0, 1, 1], [], []>} : vector<4x32xf32>, vector<32x256xf32>, vector<4x256xf32> -> vector<4x256xf32>
    %19 = vector.broadcast %15 : vector<1x256xf32> to vector<4x256xf32>
    %20 = arith.mulf %18, %19 : vector<4x256xf32>
    %21 = vector.broadcast %3 : vector<4x1xf32> to vector<4x256xf32>
    %22 = arith.addf %20, %21 : vector<4x256xf32>
    %c0_15 = arith.constant 0 : index
    %c0_16 = arith.constant 0 : index
    %c0_17 = arith.constant 0 : index
    %23 = vector.load %arg7[%c0_15, %c0_16, %c0_17] : memref<1x4x256xf32, #tpu.memory_space<vmem>>, vector<1x4x256xf32>
    %24 = vector.shape_cast %23 : vector<1x4x256xf32> to vector<4x256xf32>
    %25 = vector.shape_cast %22 : vector<4x256xf32> to vector<1x4x256xf32>
    tpu.vector_store %arg7[%c0_15, %c0_16, %c0_17], %25 {strides = array<i32>} : memref<1x4x256xf32, #tpu.memory_space<vmem>>, vector<1x4x256xf32>,
    return
  }
  func.func @transform_0(%arg0: i32, %arg1: i32) -> (i32, i32, i32) {
    %c0_i32 = arith.constant 0 : i32
    %c0_i32_0 = arith.constant 0 : i32
    %c0_i32_1 = arith.constant 0 : i32
    return %arg0, %c0_i32, %c0_i32_0 : i32, i32, i32
  }
  func.func @transform_1(%arg0: i32, %arg1: i32) -> (i32, i32, i32) {
    %c0_i32 = arith.constant 0 : i32
    %c0_i32_0 = arith.constant 0 : i32
    %c0_i32_1 = arith.constant 0 : i32
    return %arg0, %c0_i32, %c0_i32_0 : i32, i32, i32
  }
  func.func @transform_2(%arg0: i32, %arg1: i32) -> (i32, i32) {
    %c0_i32 = arith.constant 0 : i32
    %c0_i32_0 = arith.constant 0 : i32
    %c0_i32_1 = arith.constant 0 : i32
    return %c0_i32, %c0_i32_0 : i32, i32
  }
  func.func @transform_3(%arg0: i32, %arg1: i32) -> (i32, i32) {
    %c0_i32 = arith.constant 0 : i32
    %c0_i32_0 = arith.constant 0 : i32
    %c0_i32_1 = arith.constant 0 : i32
    return %c0_i32, %c0_i32_0 : i32, i32
  }
  func.func @transform_4(%arg0: i32, %arg1: i32) -> (i32, i32) {
    %c0_i32 = arith.constant 0 : i32
    %c0_i32_0 = arith.constant 0 : i32
    %c0_i32_1 = arith.constant 0 : i32
    return %c0_i32, %c0_i32_0 : i32, i32
  }
  func.func @transform_5(%arg0: i32, %arg1: i32) -> (i32, i32, i32) {
    %c0_i32 = arith.constant 0 : i32
    %c0_i32_0 = arith.constant 0 : i32
    return %arg0, %c0_i32, %arg1 : i32, i32, i32
  }
}

</mosaic_0001>

<llo_original>
// kernel: tpu_custom_call.1
$region0: #{tpu_custom_call.1}
  #allocation0 [shape = 'u32[]', space=smem, size = 0x4, offset = 0x4, fixed_abs, tag = 'smem constant byte address 0x4 - core index']
  #allocation1 [shape = 'u32[72,128]{1,0:T(1,128)}', space=vmem, size = 0x9000, scoped, tag = 'internal scratch']
  #allocation2 [shape = 'f32[32,256]{1,0:T(8,128)}', space=vmem, size = 0x8000, scoped, tag = 'scratch operand']
  #allocation3 [shape = 'f32[32,64]{1,0:T(8,128)}', space=vmem, size = 0x4000, scoped, tag = 'scratch operand']
  #allocation4 [shape = 'f32[32,64]{1,0:T(8,128)}', space=vmem, size = 0x4000, scoped, tag = 'scratch operand']
  %s0 = inlined_call_operand.vmem [shape: f32[2,4,256], index: 0, kind: input, shape index: {}]
  %s1 = inlined_call_operand.vmem [shape: f32[2,4,64], index: 1, kind: input, shape index: {}]
  %s2 = inlined_call_operand.vmem [shape: f32[96,4], index: 2, kind: input, shape index: {}]
  %s3 = inlined_call_operand.vmem [shape: f32[4,32], index: 3, kind: input, shape index: {}]
  %s4 = inlined_call_operand.vmem [shape: f32[4,1], index: 4, kind: input, shape index: {}]
  %s5 = inlined_call_operand.hbm [shape: f32[2,4,256], index: 5, kind: output, shape index: {}]
  %s6 = sld [smem:[#allocation0]]
  $region57: #{tpu_custom_call.1} parent=0
    _
  %s8 = ssub.s32 1, %s6
  %s9 = scalar_select 0, %s8, %s6
  $region1: #{tpu_custom_call.1} parent=0
    #allocation5 [shape = 'u8[8192]{0}', space=vmem, size = 0x2000, scoped, tag = 'output window, operand 0']
    #allocation6 [shape = 's32[2]{0}', space=sflag, size = 0x8, scoped, tag = 'scoped memory for tpu_custom_call.1']
    %10 = vsyncpa [#allocation6], 0
    %s11 = scalar_lea.sflag [#allocation6], 1
    %12 = vsyncpa %s11, 0
    loop: start=0, step=1, limit=4
    $region2: #{tpu_custom_call.1} parent=1 // loop_pre_header
      _
    $region3: #{tpu_custom_call.1} parent=1 // loop_header
      %s14 = sphi 0, %s18
      %p15 = scmp.ge.s32.totalorder %s14, 4
      %s21 = sphi 0, %s33
      %s22 = sphi 0, %s29
      %s23 = sphi 0, %s21
      %s24 = sphi 0, %s22
      %s25 = sphi 0, %s23
      %s26 = sphi 0, %s24
      %s36 = sphi 0, %s38
      %s39 = sphi 0, %s36
      %s40 = sphi 0, %s39
      %s56 = sphi 0, %s40
      %s62 = sphi 0, %s64
      %s65 = sphi 0, %s62
      %s66 = sphi 0, %s65
      %s82 = sphi 0, %s66
      %s86 = sphi 0, %s86
      %s88 = sphi 0, %s86
      %s89 = sphi 0, %s88
      %s103 = sphi 0, %s89
      %s107 = sphi 0, %s107
      %s109 = sphi 0, %s107
      %s110 = sphi 0, %s109
      %s124 = sphi 0, %s110
      %s128 = sphi 0, %s128
      %s130 = sphi 0, %s128
      %s131 = sphi 0, %s130
      %s145 = sphi 0, %s131
      %s153 = sphi 0, %s155
      %s156 = sphi 0, %s153
      %s157 = sphi 0, %s156
      %s173 = sphi 0, %s157
    $region4: #{tpu_custom_call.1} parent=1 // loop_header_branch
      %17 = sbr.rel (%p15) target = $region8
    $region5: #{tpu_custom_call.1} parent=1 // loop_body
      %s19 = ssub.s32 %s14, 1
      %s20 = ssub.s32 %s14, 2
      %s27 = sadd.s32 1, %s22
      %p28 = scmp.ge.s32.totalorder %s27, 1
      %s29 = scalar_select %p28, 0, %s27
      %s30 = sadd.s32 1, %s21
      %s31 = scalar_select %p28, %s30, %s21
      %p32 = scmp.ge.s32.totalorder %s31, 2
      %s33 = scalar_select %p32, 0, %s31
      %s34 = ssub.s32 %s21, %s33
      %p35 = scmp.eq.s32.totalorder %s34, 0
      %s37 = sadd.s32 %s36, 1
      %s38 = scalar_select %p35, %s36, %s37
      %p41 = pneg %p35
      %p42 = scmp.eq.s32.totalorder %s14, 1
      %p43 = por %p41, %p42
      %p44 = scmp.ne.s32.totalorder %s36, %s39
      %p45 = scmp.eq.s32.totalorder %s14, 0
      %p46 = por %p44, %p45
      %p47 = scmp.ne.s32.totalorder %s36, %s39
      %p48 = scmp.eq.s32.totalorder %s19, 1
      %p49 = por %p47, %p48
      %p50 = scmp.ne.s32.totalorder %s39, %s40
      %p51 = scmp.eq.s32.totalorder %s19, 0
      %p52 = por %p50, %p51
      %p53 = scmp.ne.s32.totalorder %s39, %s40
      %p54 = scmp.eq.s32.totalorder %s20, 1
      %p55 = por %p53, %p54
      %p57 = scmp.ne.s32.totalorder %s40, %s56
      %p58 = scmp.eq.s32.totalorder %s20, 0
      %p59 = por %p57, %p58
      %s60 = ssub.s32 %s21, %s33
      %p61 = scmp.eq.s32.totalorder %s60, 0
      %s63 = sadd.s32 %s62, 1
      %s64 = scalar_select %p61, %s62, %s63
      %p67 = pneg %p61
      %p68 = scmp.eq.s32.totalorder %s14, 1
      %p69 = por %p67, %p68
      %p70 = scmp.ne.s32.totalorder %s62, %s65
      %p71 = scmp.eq.s32.totalorder %s14, 0
      %p72 = por %p70, %p71
      %p73 = scmp.ne.s32.totalorder %s62, %s65
      %p74 = scmp.eq.s32.totalorder %s19, 1
      %p75 = por %p73, %p74
      %p76 = scmp.ne.s32.totalorder %s65, %s66
      %p77 = scmp.eq.s32.totalorder %s19, 0
      %p78 = por %p76, %p77
      %p79 = scmp.ne.s32.totalorder %s65, %s66
      %p80 = scmp.eq.s32.totalorder %s20, 1
      %p81 = por %p79, %p80
      %p83 = scmp.ne.s32.totalorder %s66, %s82
      %p84 = scmp.eq.s32.totalorder %s20, 0
      %p85 = por %p83, %p84
      %s87 = sadd.s32 %s86, 1
      %p90 = scmp.eq.s32.totalorder %s14, 1
      %p91 = scmp.ne.s32.totalorder %s86, %s88
      %p92 = scmp.eq.s32.totalorder %s14, 0
      %p93 = por %p91, %p92
      %p94 = scmp.ne.s32.totalorder %s86, %s88
      %p95 = scmp.eq.s32.totalorder %s19, 1
      %p96 = por %p94, %p95
      %p97 = scmp.ne.s32.totalorder %s88, %s89
      %p98 = scmp.eq.s32.totalorder %s19, 0
      %p99 = por %p97, %p98
      %p100 = scmp.ne.s32.totalorder %s88, %s89
      %p101 = scmp.eq.s32.totalorder %s20, 1
      %p102 = por %p100, %p101
      %p104 = scmp.ne.s32.totalorder %s89, %s103
      %p105 = scmp.eq.s32.totalorder %s20, 0
      %p106 = por %p104, %p105
      %s108 = sadd.s32 %s107, 1
      %p111 = scmp.eq.s32.totalorder %s14, 1
      %p112 = scmp.ne.s32.totalorder %s107, %s109
      %p113 = scmp.eq.s32.totalorder %s14, 0
      %p114 = por %p112, %p113
      %p115 = scmp.ne.s32.totalorder %s107, %s109
      %p116 = scmp.eq.s32.totalorder %s19, 1
      %p117 = por %p115, %p116
      %p118 = scmp.ne.s32.totalorder %s109, %s110
      %p119 = scmp.eq.s32.totalorder %s19, 0
      %p120 = por %p118, %p119
      %p121 = scmp.ne.s32.totalorder %s109, %s110
      %p122 = scmp.eq.s32.totalorder %s20, 1
      %p123 = por %p121, %p122
      %p125 = scmp.ne.s32.totalorder %s110, %s124
      %p126 = scmp.eq.s32.totalorder %s20, 0
      %p127 = por %p125, %p126
      %s129 = sadd.s32 %s128, 1
      %p132 = scmp.eq.s32.totalorder %s14, 1
      %p133 = scmp.ne.s32.totalorder %s128, %s130
      %p134 = scmp.eq.s32.totalorder %s14, 0
      %p135 = por %p133, %p134
      %p136 = scmp.ne.s32.totalorder %s128, %s130
      %p137 = scmp.eq.s32.totalorder %s19, 1
      %p138 = por %p136, %p137
      %p139 = scmp.ne.s32.totalorder %s130, %s131
      %p140 = scmp.eq.s32.totalorder %s19, 0
      %p141 = por %p139, %p140
      %p142 = scmp.ne.s32.totalorder %s130, %s131
      %p143 = scmp.eq.s32.totalorder %s20, 1
      %p144 = por %p142, %p143
      %p146 = scmp.ne.s32.totalorder %s131, %s145
      %p147 = scmp.eq.s32.totalorder %s20, 0
      %p148 = por %p146, %p147
      %s149 = ssub.s32 %s21, %s33
      %s150 = ssub.s32 %s22, %s29
      %s151 = sor.u32 %s149, %s150
      %p152 = scmp.eq.s32.totalorder %s151, 0
      %s154 = sadd.s32 %s153, 1
      %s155 = scalar_select %p152, %s153, %s154
      %p158 = pneg %p152
      %p159 = scmp.eq.s32.totalorder %s14, 1
      %p160 = por %p158, %p159
      %p161 = scmp.ne.s32.totalorder %s153, %s156
      %p162 = scmp.eq.s32.totalorder %s14, 0
      %p163 = por %p161, %p162
      %p164 = scmp.ne.s32.totalorder %s153, %s156
      %p165 = scmp.eq.s32.totalorder %s19, 1
      %p166 = por %p164, %p165
      %p167 = scmp.ne.s32.totalorder %s156, %s157
      %p168 = scmp.eq.s32.totalorder %s19, 0
      %p169 = por %p167, %p168
      %p170 = scmp.ne.s32.totalorder %s156, %s157
      %p171 = scmp.eq.s32.totalorder %s20, 1
      %p172 = por %p170, %p171
      %p174 = scmp.ne.s32.totalorder %s157, %s173
      %p175 = scmp.eq.s32.totalorder %s20, 0
      %p176 = por %p174, %p175
      %p177 = scmp.le.s32.totalorder 1, %s14
      %p178 = scmp.lt.s32.totalorder %s14, 3
      %p179 = pnand %p177, %p178
      %p180 = pneg %p179
      // Predicated region
      $region9: #{tpu_custom_call.1} parent=5 // pred_check
        _
      $region10: #{tpu_custom_call.1} parent=5 // pred_check_branch
        %182 = sbr.rel (%p179) target = $region12
      $region11: #{tpu_custom_call.1} parent=5 // pred_region
        %s183 = ssub.s32 %s14, 1
        // Predicated region
        $region13: #{tpu_custom_call.1} parent=11 // pred_check
          %p184 = pneg %p99
        $region14: #{tpu_custom_call.1} parent=11 // pred_check_branch
          %186 = sbr.rel (%p184) target = $region16
        $region15: #{tpu_custom_call.1} parent=11 // pred_region
          _
        $region16: #{tpu_custom_call.1} parent=11 // pred_fallthru
          _
        // Predicated region
        $region17: #{tpu_custom_call.1} parent=11 // pred_check
          %p187 = pneg %p120
        $region18: #{tpu_custom_call.1} parent=11 // pred_check_branch
          %189 = sbr.rel (%p187) target = $region20
        $region19: #{tpu_custom_call.1} parent=11 // pred_region
          _
        $region20: #{tpu_custom_call.1} parent=11 // pred_fallthru
          _
        // Predicated region
        $region21: #{tpu_custom_call.1} parent=11 // pred_check
          %p190 = pneg %p141
        $region22: #{tpu_custom_call.1} parent=11 // pred_check_branch
          %192 = sbr.rel (%p190) target = $region24
        $region23: #{tpu_custom_call.1} parent=11 // pred_region
          _
        $region24: #{tpu_custom_call.1} parent=11 // pred_fallthru
          _
      $region12: #{tpu_custom_call.1} parent=5 // pred_fallthru
        _
      %p193 = scmp.lt.s32.totalorder %s14, 2
      // Predicated region
      $region25: #{tpu_custom_call.1} parent=5 // pred_check
        %p194 = pneg %p193
      $region26: #{tpu_custom_call.1} parent=5 // pred_check_branch
        %196 = sbr.rel (%p194) target = $region28
      $region27: #{tpu_custom_call.1} parent=5 // pred_region
        // Predicated region
        $region29: #{tpu_custom_call.1} parent=27 // pred_check
          %p197 = pneg %p46
        $region30: #{tpu_custom_call.1} parent=27 // pred_check_branch
          %199 = sbr.rel (%p197) target = $region32
        $region31: #{tpu_custom_call.1} parent=27 // pred_region
          %p200 = scmp.lt.s32.totalorder %s21, 1
          %s201 = scalar_select %p200, %s21, 1
          %s202 = smul.addr %s201, 2
          %s203 = smul.addr %s202, 4
          %s204 = scalar_lea.vmem %s0, %s203
        $region32: #{tpu_custom_call.1} parent=27 // pred_fallthru
          _
        // Predicated region
        $region33: #{tpu_custom_call.1} parent=27 // pred_check
          %p205 = pneg %p72
        $region34: #{tpu_custom_call.1} parent=27 // pred_check_branch
          %207 = sbr.rel (%p205) target = $region36
        $region35: #{tpu_custom_call.1} parent=27 // pred_region
          %p208 = scmp.lt.s32.totalorder %s21, 1
          %s209 = scalar_select %p208, %s21, 1
          %s210 = smul.addr %s209, 4
          %s211 = scalar_lea.vmem %s1, %s210
        $region36: #{tpu_custom_call.1} parent=27 // pred_fallthru
          _
      $region28: #{tpu_custom_call.1} parent=5 // pred_fallthru
        _
      %p212 = scmp.le.s32.totalorder 1, %s14
      %p213 = scmp.lt.s32.totalorder %s14, 3
      %p214 = pnand %p212, %p213
      %p215 = pneg %p214
      // Predicated region
      $region37: #{tpu_custom_call.1} parent=5 // pred_check
        _
      $region38: #{tpu_custom_call.1} parent=5 // pred_check_branch
        %217 = sbr.rel (%p214) target = $region40
      $region39: #{tpu_custom_call.1} parent=5 // pred_region
        %s218 = ssub.s32 %s14, 1
        %p219 = scmp.lt.s32.totalorder %s23, 1
        %s220 = scalar_select %p219, %s23, 1
        %s221 = smul.addr %s220, 2
        %s222 = smul.addr %s221, 4
        %s223 = scalar_lea.vmem %s0, %s222
        %p224 = pneg %p52
        %p225 = pneg %p49
        %p226 = scmp.lt.s32.totalorder %s23, 1
        %s227 = scalar_select %p226, %s23, 1
        %s228 = smul.addr %s227, 4
        %s229 = scalar_lea.vmem %s1, %s228
        %p230 = pneg %p78
        %p231 = pneg %p75
        %p232 = pneg %p99
        %p233 = pneg %p96
        %p234 = pneg %p120
        %p235 = pneg %p117
        %p236 = pneg %p141
        %p237 = pneg %p138
        %p238 = pneg %p169
        %p239 = pneg %p166
        %s240 = sand.u32 %s156, 1
        %s241 = scalar_lea.sflag [#allocation6], %s240
        %s242 = sand.u32 %s156, 1
        %s243 = smul.addr %s242, 8
        %s244 = scalar_lea.vmem [#allocation5], %s243
        %p245 = scmp.lt.s32.totalorder %s23, 1
        %s246 = scalar_select %p245, %s23, 1
        %s247 = smul.addr %s246, 2
        %s248 = smul.addr %s247, 4
        %s249 = scalar_lea.vmem %s0, %s248
        %p250 = scmp.lt.s32.totalorder %s23, 1
        %s251 = scalar_select %p250, %s23, 1
        %s252 = smul.addr %s251, 4
        %s253 = scalar_lea.vmem %s1, %s252
        %s254 = smul.u32 2, %s24
        %p255 = scmp.eq.s32.totalorder %s24, 0
        // Predicated region
        $region41: #{tpu_custom_call.1} parent=39 // pred_check
          %p256 = pneg %p255
        $region42: #{tpu_custom_call.1} parent=39 // pred_check_branch
          %258 = sbr.rel (%p256) target = $region44
        $region43: #{tpu_custom_call.1} parent=39 // pred_region
          %v259 = vld [vmem:[%s249] sm:$0xff]
          %v260 = vld [vmem:[%s253] sm:$0xf]
          %v261 = vld [vmem:[%s2] sm:$0xff]
          %v262 = vld [vmem:[%s2 + $0x8] sm:$0xff]
          %v263 = vld [vmem:[%s2 + $0x10] sm:$0xff]
          %v264 = vld [vmem:[%s2 + $0x18] sm:$0xff]
          %v265 = vld [vmem:[%s2 + $0x20] sm:$0xff]
          %v266 = vld [vmem:[%s2 + $0x28] sm:$0xff]
          %v267 = vld [vmem:[%s2 + $0x30] sm:$0xff]
          %v268 = vld [vmem:[%s2 + $0x38] sm:$0xff]
          %v269 = vld [vmem:[%s2 + $0x40] sm:$0xff]
          %v270 = vld [vmem:[%s2 + $0x48] sm:$0xff]
          %v271 = vld [vmem:[%s2 + $0x50] sm:$0xff]
          %v272 = vld [vmem:[%s2 + $0x58] sm:$0xff]
          %274 = vst [vmem:[#allocation1] ss:$2 sm:$0xff] %v259
          %v275 = vld.sshfl [vmem:[#allocation1] sm:$0xff pattern:$0x75316420]
          %v276 = vld.sshfl [vmem:[#allocation1 + $0x8] sm:$0xff pattern:$0x75316420]
          %vm277 = vcmask 31744
          %v279 = vsel %vm277, %v261, 0
          %v282 = vsel %vm277, %v262, 0
          %v285 = vsel %vm277, %v263, 0
          %v288 = vsel %vm277, %v264, 0
          %vm290 = vcmask 1043456
          %v291 = vsel %vm290, %v275, 0
          %v293 = vsel %vm290, %v276, 0
          %295 = vmatpush.msra.mxu0 0.0
          %296 = vmatpush.msra.mxu0 0.0
          %297 = vmatpush.msra.mxu0 0.0
          %298 = vmatpush.msra.mxu0 0.0
          %299 = vmatpush.msra.mxu0 0.0
          %300 = vmatpush.msra.mxu0 0.0
          %301 = vmatpush.msra.mxu0 0.0
          %302 = vmatpush.msra.mxu0 0.0
          %303 = vmatpush.msra.mxu0 0.0
          %304 = vmatpush.msra.mxu0 0.0
          %305 = vmatpush.msra.mxu0 0.0
          %306 = vmatpush.msra.mxu0 0.0
          %307 = vmatpush.msra.mxu0 0.0
          %308 = vmatpush.msra.mxu0 0.0
          %309 = vmatpush.msra.mxu0 0.0
          %310 = vmatpush.msra.mxu0 %v291
          %311 = vmatmul.f32.gmra.mxu0 %v279
          %v312 = vpop.f32.mrf.mxu0
          %v313 = vadd.f32 0.0, %v312
          %314 = vmatmul.f32.gmra.mxu0 %v282
          %v315 = vpop.f32.mrf.mxu0
          %v316 = vadd.f32 0.0, %v315
          %317 = vmatmul.f32.gmra.mxu0 %v285
          %v318 = vpop.f32.mrf.mxu0
          %v319 = vadd.f32 0.0, %v318
          %320 = vmatmul.f32.gmra.mxu0 %v288
          %v321 = vpop.f32.mrf.mxu0
          %v322 = vadd.f32 0.0, %v321
          %323 = vdwg.mxu0
          %324 = vmatpush.msra.mxu0 0.0
          %325 = vmatpush.msra.mxu0 0.0
          %326 = vmatpush.msra.mxu0 0.0
          %327 = vmatpush.msra.mxu0 0.0
          %328 = vmatpush.msra.mxu0 0.0
          %329 = vmatpush.msra.mxu0 0.0
          %330 = vmatpush.msra.mxu0 0.0
          %331 = vmatpush.msra.mxu0 0.0
          %332 = vmatpush.msra.mxu0 0.0
          %333 = vmatpush.msra.mxu0 0.0
          %334 = vmatpush.msra.mxu0 0.0
          %335 = vmatpush.msra.mxu0 0.0
          %336 = vmatpush.msra.mxu0 0.0
          %337 = vmatpush.msra.mxu0 0.0
          %338 = vmatpush.msra.mxu0 0.0
          %339 = vmatpush.msra.mxu0 %v293
          %340 = vmatmul.f32.gmra.mxu0 %v279
          %v341 = vpop.f32.mrf.mxu0
          %v342 = vadd.f32 0.0, %v341
          %343 = vmatmul.f32.gmra.mxu0 %v282
          %v344 = vpop.f32.mrf.mxu0
          %v345 = vadd.f32 0.0, %v344
          %346 = vmatmul.f32.gmra.mxu0 %v285
          %v347 = vpop.f32.mrf.mxu0
          %v348 = vadd.f32 0.0, %v347
          %349 = vmatmul.f32.gmra.mxu0 %v288
          %v350 = vpop.f32.mrf.mxu0
          %v351 = vadd.f32 0.0, %v350
          %352 = vdwg.mxu0
          %v354 = vsel %vm277, %v265, 0
          %v357 = vsel %vm277, %v266, 0
          %v360 = vsel %vm277, %v267, 0
          %v363 = vsel %vm277, %v268, 0
          %v366 = vsel %vm277, %v269, 0
          %v369 = vsel %vm277, %v270, 0
          %v372 = vsel %vm277, %v271, 0
          %v375 = vsel %vm277, %v272, 0
          %v378 = vsel %vm290, %v260, 0
          %380 = vmatpush.msra.mxu0 0.0
          %381 = vmatpush.msra.mxu0 0.0
          %382 = vmatpush.msra.mxu0 0.0
          %383 = vmatpush.msra.mxu0 0.0
          %384 = vmatpush.msra.mxu0 0.0
          %385 = vmatpush.msra.mxu0 0.0
          %386 = vmatpush.msra.mxu0 0.0
          %387 = vmatpush.msra.mxu0 0.0
          %388 = vmatpush.msra.mxu0 0.0
          %389 = vmatpush.msra.mxu0 0.0
          %390 = vmatpush.msra.mxu0 0.0
          %391 = vmatpush.msra.mxu0 0.0
          %392 = vmatpush.msra.mxu0 0.0
          %393 = vmatpush.msra.mxu0 0.0
          %394 = vmatpush.msra.mxu0 0.0
          %395 = vmatpush.msra.mxu0 %v378
          %396 = vmatmul.f32.gmra.mxu0 %v354
          %v397 = vpop.f32.mrf.mxu0
          %v398 = vadd.f32 0.0, %v397
          %399 = vmatmul.f32.gmra.mxu0 %v357
          %v400 = vpop.f32.mrf.mxu0
          %v401 = vadd.f32 0.0, %v400
          %402 = vmatmul.f32.gmra.mxu0 %v360
          %v403 = vpop.f32.mrf.mxu0
          %v404 = vadd.f32 0.0, %v403
          %405 = vmatmul.f32.gmra.mxu0 %v363
          %v406 = vpop.f32.mrf.mxu0
          %v407 = vadd.f32 0.0, %v406
          %408 = vmatmul.f32.gmra.mxu0 %v366
          %v409 = vpop.f32.mrf.mxu0
          %v410 = vadd.f32 0.0, %v409
          %411 = vmatmul.f32.gmra.mxu0 %v369
          %v412 = vpop.f32.mrf.mxu0
          %v413 = vadd.f32 0.0, %v412
          %414 = vmatmul.f32.gmra.mxu0 %v372
          %v415 = vpop.f32.mrf.mxu0
          %v416 = vadd.f32 0.0, %v415
          %417 = vmatmul.f32.gmra.mxu0 %v375
          %v418 = vpop.f32.mrf.mxu0
          %v419 = vadd.f32 0.0, %v418
          %420 = vdwg.mxu0
          %v421 = vmul.f32 %v313, %v313
          %v422 = vmul.f32 %v342, %v342
          %v423 = vmul.f32 %v316, %v316
          %v424 = vmul.f32 %v345, %v345
          %v425 = vmul.f32 %v319, %v319
          %v426 = vmul.f32 %v348, %v348
          %v427 = vmul.f32 %v322, %v322
          %v428 = vmul.f32 %v351, %v351
          %v429 = vadd.f32 %v421, %v422
          %430 = vadd.xlane.f32.xlu0 %v429
          %v431 = vpop.xlane.xlu0 %430
          %v432 = vadd.f32 %v423, %v424
          %433 = vadd.xlane.f32.xlu0 %v432
          %v434 = vpop.xlane.xlu0 %433
          %v435 = vadd.f32 %v425, %v426
          %436 = vadd.xlane.f32.xlu0 %v435
          %v437 = vpop.xlane.xlu0 %436
          %v438 = vadd.f32 %v427, %v428
          %439 = vadd.xlane.f32.xlu0 %v438
          %v440 = vpop.xlane.xlu0 %439
          %v441 = vmax.f32 %v431, 1e-24
          %v442 = vmax.f32 %v434, 1e-24
          %v443 = vmax.f32 %v437, 1e-24
          %v444 = vmax.f32 %v440, 1e-24
          %v445 = vrsqrt.pop %v441
          %v446 = vmul.f32 %v445, %v441
          %v447 = vmul.f32 %v446, %v445
          %v448 = vmul.f32 0.5, %v447
          %v449 = vsub.f32 1.5, %v448
          %v450 = vmul.f32 %v445, %v449
          %vm451 = vweird.f32 %v441
          %vm452 = vweird.f32 %v445
          %vm453 = vmor %vm451, %vm452
          %v454 = vsel %vm453, %v445, %v450
          %v455 = vrsqrt.pop %v442
          %v456 = vmul.f32 %v455, %v442
          %v457 = vmul.f32 %v456, %v455
          %v458 = vmul.f32 0.5, %v457
          %v459 = vsub.f32 1.5, %v458
          %v460 = vmul.f32 %v455, %v459
          %vm461 = vweird.f32 %v442
          %vm462 = vweird.f32 %v455
          %vm463 = vmor %vm461, %vm462
          %v464 = vsel %vm463, %v455, %v460
          %v465 = vrsqrt.pop %v443
          %v466 = vmul.f32 %v465, %v443
          %v467 = vmul.f32 %v466, %v465
          %v468 = vmul.f32 0.5, %v467
          %v469 = vsub.f32 1.5, %v468
          %v470 = vmul.f32 %v465, %v469
          %vm471 = vweird.f32 %v443
          %vm472 = vweird.f32 %v465
          %vm473 = vmor %vm471, %vm472
          %v474 = vsel %vm473, %v465, %v470
          %v475 = vrsqrt.pop %v444
          %v476 = vmul.f32 %v475, %v444
          %v477 = vmul.f32 %v476, %v475
          %v478 = vmul.f32 0.5, %v477
          %v479 = vsub.f32 1.5, %v478
          %v480 = vmul.f32 %v475, %v479
          %vm481 = vweird.f32 %v444
          %vm482 = vweird.f32 %v475
          %vm483 = vmor %vm481, %vm482
          %v484 = vsel %vm483, %v475, %v480
          %v485 = vmul.f32 %v398, %v398
          %v486 = vmul.f32 %v401, %v401
          %v487 = vmul.f32 %v404, %v404
          %v488 = vmul.f32 %v407, %v407
          %vm489 = vcmask 523264
          %v490 = vsel %vm489, %v485, 0.0
          %491 = vadd.xlane.f32.xlu0 %v490
          %v492 = vpop.xlane.xlu0 %491
          %v493 = vsel %vm489, %v486, 0.0
          %494 = vadd.xlane.f32.xlu0 %v493
          %v495 = vpop.xlane.xlu0 %494
          %v496 = vsel %vm489, %v487, 0.0
          %497 = vadd.xlane.f32.xlu0 %v496
          %v498 = vpop.xlane.xlu0 %497
          %v499 = vsel %vm489, %v488, 0.0
          %500 = vadd.xlane.f32.xlu0 %v499
          %v501 = vpop.xlane.xlu0 %500
          %v502 = vmax.f32 %v492, 1e-24
          %v503 = vmax.f32 %v495, 1e-24
          %v504 = vmax.f32 %v498, 1e-24
          %v505 = vmax.f32 %v501, 1e-24
          %v506 = vrsqrt.pop %v502
          %v507 = vmul.f32 %v506, %v502
          %v508 = vmul.f32 %v507, %v506
          %v509 = vmul.f32 0.5, %v508
          %v510 = vsub.f32 1.5, %v509
          %v511 = vmul.f32 %v506, %v510
          %vm512 = vweird.f32 %v502
          %vm513 = vweird.f32 %v506
          %vm514 = vmor %vm512, %vm513
          %v515 = vsel %vm514, %v506, %v511
          %v516 = vrsqrt.pop %v503
          %v517 = vmul.f32 %v516, %v503
          %v518 = vmul.f32 %v517, %v516
          %v519 = vmul.f32 0.5, %v518
          %v520 = vsub.f32 1.5, %v519
          %v521 = vmul.f32 %v516, %v520
          %vm522 = vweird.f32 %v503
          %vm523 = vweird.f32 %v516
          %vm524 = vmor %vm522, %vm523
          %v525 = vsel %vm524, %v516, %v521
          %v526 = vrsqrt.pop %v504
          %v527 = vmul.f32 %v526, %v504
          %v528 = vmul.f32 %v527, %v526
          %v529 = vmul.f32 0.5, %v528
          %v530 = vsub.f32 1.5, %v529
          %v531 = vmul.f32 %v526, %v530
          %vm532 = vweird.f32 %v504
          %vm533 = vweird.f32 %v526
          %vm534 = vmor %vm532, %vm533
          %v535 = vsel %vm534, %v526, %v531
          %v536 = vrsqrt.pop %v505
          %v537 = vmul.f32 %v536, %v505
          %v538 = vmul.f32 %v537, %v536
          %v539 = vmul.f32 0.5, %v538
          %v540 = vsub.f32 1.5, %v539
          %v541 = vmul.f32 %v536, %v540
          %vm542 = vweird.f32 %v505
          %vm543 = vweird.f32 %v536
          %vm544 = vmor %vm542, %vm543
          %v545 = vsel %vm544, %v536, %v541
          %v546 = vmul.f32 %v454, 10.0
          %v547 = vmul.f32 %v464, 10.0
          %v548 = vmul.f32 %v474, 10.0
          %v549 = vmul.f32 %v484, 10.0
          %v550 = vmul.f32 %v313, %v546
          %v551 = vmul.f32 %v342, %v546
          %v552 = vmul.f32 %v316, %v547
          %v553 = vmul.f32 %v345, %v547
          %v554 = vmul.f32 %v319, %v548
          %v555 = vmul.f32 %v348, %v548
          %v556 = vmul.f32 %v322, %v549
          %v557 = vmul.f32 %v351, %v549
          %558 = vst [vmem:[#allocation2] sm:$0xff] %v550
          %559 = vst [vmem:[#allocation2 + $0x8] sm:$0xff] %v551
          %560 = vst [vmem:[#allocation2 + $0x10] sm:$0xff] %v552
          %561 = vst [vmem:[#allocation2 + $0x18] sm:$0xff] %v553
          %562 = vst [vmem:[#allocation2 + $0x20] sm:$0xff] %v554
          %563 = vst [vmem:[#allocation2 + $0x28] sm:$0xff] %v555
          %564 = vst [vmem:[#allocation2 + $0x30] sm:$0xff] %v556
          %565 = vst [vmem:[#allocation2 + $0x38] sm:$0xff] %v557
          %v566 = vmul.f32 %v398, %v515
          %v567 = vmul.f32 %v401, %v525
          %v568 = vmul.f32 %v404, %v535
          %v569 = vmul.f32 %v407, %v545
          %570 = vst.msk [vmem:[#allocation3] sm:$0xff] %vm489, %v566
          %571 = vst.msk [vmem:[#allocation3 + $0x8] sm:$0xff] %vm489, %v567
          %572 = vst.msk [vmem:[#allocation3 + $0x10] sm:$0xff] %vm489, %v568
          %573 = vst.msk [vmem:[#allocation3 + $0x18] sm:$0xff] %vm489, %v569
          %574 = vst.msk [vmem:[#allocation4] sm:$0xff] %vm489, %v410
          %575 = vst.msk [vmem:[#allocation4 + $0x8] sm:$0xff] %vm489, %v413
          %576 = vst.msk [vmem:[#allocation4 + $0x10] sm:$0xff] %vm489, %v416
          %577 = vst.msk [vmem:[#allocation4 + $0x18] sm:$0xff] %vm489, %v419
        $region44: #{tpu_custom_call.1} parent=39 // pred_fallthru
          _
        %v578 = vld [vmem:[%s4] sm:$0xf]
        %v579 = vld [vmem:[#allocation2] sm:$0xff]
        %v580 = vld [vmem:[#allocation2 + $0x8] sm:$0xff]
        %v581 = vld [vmem:[#allocation2 + $0x10] sm:$0xff]
        %v582 = vld [vmem:[#allocation2 + $0x18] sm:$0xff]
        %v583 = vld [vmem:[#allocation2 + $0x20] sm:$0xff]
        %v584 = vld [vmem:[#allocation2 + $0x28] sm:$0xff]
        %v585 = vld [vmem:[#allocation2 + $0x30] sm:$0xff]
        %v586 = vld [vmem:[#allocation2 + $0x38] sm:$0xff]
        %v587 = vld [vmem:[#allocation3] sm:$0xff]
        %v588 = vld [vmem:[#allocation3 + $0x8] sm:$0xff]
        %v589 = vld [vmem:[#allocation3 + $0x10] sm:$0xff]
        %v590 = vld [vmem:[#allocation3 + $0x18] sm:$0xff]
        %v591 = vld [vmem:[#allocation4] sm:$0xff]
        %v592 = vld [vmem:[#allocation4 + $0x8] sm:$0xff]
        %v593 = vld [vmem:[#allocation4 + $0x10] sm:$0xff]
        %v594 = vld [vmem:[#allocation4 + $0x18] sm:$0xff]
        %595 = vxpose.xlu0.b32.start [1/16] %v579, 128
        %596 = vxpose.xlu0.b32.cont [2/16] %v581, 128
        %597 = vxpose.xlu0.b32.cont [3/16] %v583, 128
        %598 = vxpose.xlu0.b32.cont [4/16] %v585, 128
        %599 = vxpose.xlu0.b32.cont [5/16] 0.0, 128
        %600 = vxpose.xlu0.b32.cont [6/16] 0.0, 128
        %601 = vxpose.xlu0.b32.cont [7/16] 0.0, 128
        %602 = vxpose.xlu0.b32.cont [8/16] 0.0, 128
        %603 = vxpose.xlu0.b32.cont [9/16] 0.0, 128
        %604 = vxpose.xlu0.b32.cont [10/16] 0.0, 128
        %605 = vxpose.xlu0.b32.cont [11/16] 0.0, 128
        %606 = vxpose.xlu0.b32.cont [12/16] 0.0, 128
        %607 = vxpose.xlu0.b32.cont [13/16] 0.0, 128
        %608 = vxpose.xlu0.b32.cont [14/16] 0.0, 128
        %609 = vxpose.xlu0.b32.cont [15/16] 0.0, 128
        %610 = vxpose.xlu0.b32.end [16/16] 0.0, 128
        %v611 = vpop.trf.xlu0
        %v612 = vpop.trf.xlu0
        %v613 = vpop.trf.xlu0
        %v614 = vpop.trf.xlu0
        %v615 = vpop.trf.xlu0
        %v616 = vpop.trf.xlu0
        %v617 = vpop.trf.xlu0
        %v618 = vpop.trf.xlu0
        %v619 = vpop.trf.xlu0
        %v620 = vpop.trf.xlu0
        %v621 = vpop.trf.xlu0
        %v622 = vpop.trf.xlu0
        %v623 = vpop.trf.xlu0
        %v624 = vpop.trf.xlu0
        %v625 = vpop.trf.xlu0
        %v626 = vpop.trf.xlu0
        %627 = vxpose.xlu0.b32.start [1/16] %v580, 128
        %628 = vxpose.xlu0.b32.cont [2/16] %v582, 128
        %629 = vxpose.xlu0.b32.cont [3/16] %v584, 128
        %630 = vxpose.xlu0.b32.cont [4/16] %v586, 128
        %631 = vxpose.xlu0.b32.cont [5/16] 0.0, 128
        %632 = vxpose.xlu0.b32.cont [6/16] 0.0, 128
        %633 = vxpose.xlu0.b32.cont [7/16] 0.0, 128
        %634 = vxpose.xlu0.b32.cont [8/16] 0.0, 128
        %635 = vxpose.xlu0.b32.cont [9/16] 0.0, 128
        %636 = vxpose.xlu0.b32.cont [10/16] 0.0, 128
        %637 = vxpose.xlu0.b32.cont [11/16] 0.0, 128
        %638 = vxpose.xlu0.b32.cont [12/16] 0.0, 128
        %639 = vxpose.xlu0.b32.cont [13/16] 0.0, 128
        %640 = vxpose.xlu0.b32.cont [14/16] 0.0, 128
        %641 = vxpose.xlu0.b32.cont [15/16] 0.0, 128
        %642 = vxpose.xlu0.b32.end [16/16] 0.0, 128
        %v643 = vpop.trf.xlu0
        %v644 = vpop.trf.xlu0
        %v645 = vpop.trf.xlu0
        %v646 = vpop.trf.xlu0
        %v647 = vpop.trf.xlu0
        %v648 = vpop.trf.xlu0
        %v649 = vpop.trf.xlu0
        %v650 = vpop.trf.xlu0
        %v651 = vpop.trf.xlu0
        %v652 = vpop.trf.xlu0
        %v653 = vpop.trf.xlu0
        %v654 = vpop.trf.xlu0
        %v655 = vpop.trf.xlu0
        %v656 = vpop.trf.xlu0
        %v657 = vpop.trf.xlu0
        %v658 = vpop.trf.xlu0
        %vm659 = vcmask 261120
        %v661 = vsel %vm659, %v611, 0
        %v664 = vsel %vm659, %v612, 0
        %v667 = vsel %vm659, %v613, 0
        %v670 = vsel %vm659, %v614, 0
        %v673 = vsel %vm659, %v615, 0
        %v676 = vsel %vm659, %v616, 0
        %v679 = vsel %vm659, %v617, 0
        %v682 = vsel %vm659, %v618, 0
        %v685 = vsel %vm659, %v619, 0
        %v688 = vsel %vm659, %v620, 0
        %v691 = vsel %vm659, %v621, 0
        %v694 = vsel %vm659, %v622, 0
        %v697 = vsel %vm659, %v623, 0
        %v700 = vsel %vm659, %v624, 0
        %v703 = vsel %vm659, %v625, 0
        %v706 = vsel %vm659, %v626, 0
        %v709 = vsel %vm659, %v643, 0
        %v712 = vsel %vm659, %v644, 0
        %v715 = vsel %vm659, %v645, 0
        %v718 = vsel %vm659, %v646, 0
        %v721 = vsel %vm659, %v647, 0
        %v724 = vsel %vm659, %v648, 0
        %v727 = vsel %vm659, %v649, 0
        %v730 = vsel %vm659, %v650, 0
        %v733 = vsel %vm659, %v651, 0
        %v736 = vsel %vm659, %v652, 0
        %v739 = vsel %vm659, %v653, 0
        %v742 = vsel %vm659, %v654, 0
        %v745 = vsel %vm659, %v655, 0
        %v748 = vsel %vm659, %v656, 0
        %v751 = vsel %vm659, %v657, 0
        %v754 = vsel %vm659, %v658, 0
        %756 = vmatpush.msra.mxu0 0.0
        %757 = vmatpush.msra.mxu0 0.0
        %758 = vmatpush.msra.mxu0 0.0
        %759 = vmatpush.msra.mxu0 0.0
        %760 = vmatpush.msra.mxu0 0.0
        %761 = vmatpush.msra.mxu0 0.0
        %762 = vmatpush.msra.mxu0 0.0
        %763 = vmatpush.msra.mxu0 0.0
        %764 = vmatpush.msra.mxu0 0.0
        %765 = vmatpush.msra.mxu0 0.0
        %766 = vmatpush.msra.mxu0 0.0
        %767 = vmatpush.msra.mxu0 0.0
        %768 = vmatpush.msra.mxu0 %v590
        %769 = vmatpush.msra.mxu0 %v589
        %770 = vmatpush.msra.mxu0 %v588
        %771 = vmatpush.msra.mxu0 %v587
        %772 = vmatmul.f32.gmra.mxu0 %v661
        %v773 = vpop.f32.mrf.mxu0
        %v774 = vadd.f32 0.0, %v773
        %775 = vmatmul.f32.gmra.mxu0 %v664
        %v776 = vpop.f32.mrf.mxu0
        %v777 = vadd.f32 0.0, %v776
        %778 = vmatmul.f32.gmra.mxu0 %v667
        %v779 = vpop.f32.mrf.mxu0
        %v780 = vadd.f32 0.0, %v779
        %781 = vmatmul.f32.gmra.mxu0 %v670
        %v782 = vpop.f32.mrf.mxu0
        %v783 = vadd.f32 0.0, %v782
        %784 = vmatmul.f32.gmra.mxu0 %v673
        %v785 = vpop.f32.mrf.mxu0
        %v786 = vadd.f32 0.0, %v785
        %787 = vmatmul.f32.gmra.mxu0 %v676
        %v788 = vpop.f32.mrf.mxu0
        %v789 = vadd.f32 0.0, %v788
        %790 = vmatmul.f32.gmra.mxu0 %v679
        %v791 = vpop.f32.mrf.mxu0
        %v792 = vadd.f32 0.0, %v791
        %793 = vmatmul.f32.gmra.mxu0 %v682
        %v794 = vpop.f32.mrf.mxu0
        %v795 = vadd.f32 0.0, %v794
        %796 = vmatmul.f32.gmra.mxu0 %v685
        %v797 = vpop.f32.mrf.mxu0
        %v798 = vadd.f32 0.0, %v797
        %799 = vmatmul.f32.gmra.mxu0 %v688
        %v800 = vpop.f32.mrf.mxu0
        %v801 = vadd.f32 0.0, %v800
        %802 = vmatmul.f32.gmra.mxu0 %v691
        %v803 = vpop.f32.mrf.mxu0
        %v804 = vadd.f32 0.0, %v803
        %805 = vmatmul.f32.gmra.mxu0 %v694
        %v806 = vpop.f32.mrf.mxu0
        %v807 = vadd.f32 0.0, %v806
        %808 = vmatmul.f32.gmra.mxu0 %v697
        %v809 = vpop.f32.mrf.mxu0
        %v810 = vadd.f32 0.0, %v809
        %811 = vmatmul.f32.gmra.mxu0 %v700
        %v812 = vpop.f32.mrf.mxu0
        %v813 = vadd.f32 0.0, %v812
        %814 = vmatmul.f32.gmra.mxu0 %v703
        %v815 = vpop.f32.mrf.mxu0
        %v816 = vadd.f32 0.0, %v815
        %817 = vmatmul.f32.gmra.mxu0 %v706
        %v818 = vpop.f32.mrf.mxu0
        %v819 = vadd.f32 0.0, %v818
        %820 = vmatmul.f32.gmra.mxu0 %v709
        %v821 = vpop.f32.mrf.mxu0
        %v822 = vadd.f32 0.0, %v821
        %823 = vmatmul.f32.gmra.mxu0 %v712
        %v824 = vpop.f32.mrf.mxu0
        %v825 = vadd.f32 0.0, %v824
        %826 = vmatmul.f32.gmra.mxu0 %v715
        %v827 = vpop.f32.mrf.mxu0
        %v828 = vadd.f32 0.0, %v827
        %829 = vmatmul.f32.gmra.mxu0 %v718
        %v830 = vpop.f32.mrf.mxu0
        %v831 = vadd.f32 0.0, %v830
        %832 = vmatmul.f32.gmra.mxu0 %v721
        %v833 = vpop.f32.mrf.mxu0
        %v834 = vadd.f32 0.0, %v833
        %835 = vmatmul.f32.gmra.mxu0 %v724
        %v836 = vpop.f32.mrf.mxu0
        %v837 = vadd.f32 0.0, %v836
        %838 = vmatmul.f32.gmra.mxu0 %v727
        %v839 = vpop.f32.mrf.mxu0
        %v840 = vadd.f32 0.0, %v839
        %841 = vmatmul.f32.gmra.mxu0 %v730
        %v842 = vpop.f32.mrf.mxu0
        %v843 = vadd.f32 0.0, %v842
        %844 = vmatmul.f32.gmra.mxu0 %v733
        %v845 = vpop.f32.mrf.mxu0
        %v846 = vadd.f32 0.0, %v845
        %847 = vmatmul.f32.gmra.mxu0 %v736
        %v848 = vpop.f32.mrf.mxu0
        %v849 = vadd.f32 0.0, %v848
        %850 = vmatmul.f32.gmra.mxu0 %v739
        %v851 = vpop.f32.mrf.mxu0
        %v852 = vadd.f32 0.0, %v851
        %853 = vmatmul.f32.gmra.mxu0 %v742
        %v854 = vpop.f32.mrf.mxu0
        %v855 = vadd.f32 0.0, %v854
        %856 = vmatmul.f32.gmra.mxu0 %v745
        %v857 = vpop.f32.mrf.mxu0
        %v858 = vadd.f32 0.0, %v857
        %859 = vmatmul.f32.gmra.mxu0 %v748
        %v860 = vpop.f32.mrf.mxu0
        %v861 = vadd.f32 0.0, %v860
        %862 = vmatmul.f32.gmra.mxu0 %v751
        %v863 = vpop.f32.mrf.mxu0
        %v864 = vadd.f32 0.0, %v863
        %865 = vmatmul.f32.gmra.mxu0 %v754
        %v866 = vpop.f32.mrf.mxu0
        %v867 = vadd.f32 0.0, %v866
        %868 = vdwg.mxu0
        %vm869 = vcmask 523264
        %v870 = vsel %vm869, %v774, -inf
        %871 = vmax.xlane.f32.xlu0 %v870
        %v872 = vpop.xlane.xlu0 %871
        %v873 = vsel %vm869, %v777, -inf
        %874 = vmax.xlane.f32.xlu0 %v873
        %v875 = vpop.xlane.xlu0 %874
        %v876 = vsel %vm869, %v780, -inf
        %877 = vmax.xlane.f32.xlu0 %v876
        %v878 = vpop.xlane.xlu0 %877
        %v879 = vsel %vm869, %v783, -inf
        %880 = vmax.xlane.f32.xlu0 %v879
        %v881 = vpop.xlane.xlu0 %880
        %v882 = vsel %vm869, %v786, -inf
        %883 = vmax.xlane.f32.xlu0 %v882
        %v884 = vpop.xlane.xlu0 %883
        %v885 = vsel %vm869, %v789, -inf
        %886 = vmax.xlane.f32.xlu0 %v885
        %v887 = vpop.xlane.xlu0 %886
        %v888 = vsel %vm869, %v792, -inf
        %889 = vmax.xlane.f32.xlu0 %v888
        %v890 = vpop.xlane.xlu0 %889
        %v891 = vsel %vm869, %v795, -inf
        %892 = vmax.xlane.f32.xlu0 %v891
        %v893 = vpop.xlane.xlu0 %892
        %v894 = vsel %vm869, %v798, -inf
        %895 = vmax.xlane.f32.xlu0 %v894
        %v896 = vpop.xlane.xlu0 %895
        %v897 = vsel %vm869, %v801, -inf
        %898 = vmax.xlane.f32.xlu0 %v897
        %v899 = vpop.xlane.xlu0 %898
        %v900 = vsel %vm869, %v804, -inf
        %901 = vmax.xlane.f32.xlu0 %v900
        %v902 = vpop.xlane.xlu0 %901
        %v903 = vsel %vm869, %v807, -inf
        %904 = vmax.xlane.f32.xlu0 %v903
        %v905 = vpop.xlane.xlu0 %904
        %v906 = vsel %vm869, %v810, -inf
        %907 = vmax.xlane.f32.xlu0 %v906
        %v908 = vpop.xlane.xlu0 %907
        %v909 = vsel %vm869, %v813, -inf
        %910 = vmax.xlane.f32.xlu0 %v909
        %v911 = vpop.xlane.xlu0 %910
        %v912 = vsel %vm869, %v816, -inf
        %913 = vmax.xlane.f32.xlu0 %v912
        %v914 = vpop.xlane.xlu0 %913
        %v915 = vsel %vm869, %v819, -inf
        %916 = vmax.xlane.f32.xlu0 %v915
        %v917 = vpop.xlane.xlu0 %916
        %v918 = vsel %vm869, %v822, -inf
        %919 = vmax.xlane.f32.xlu0 %v918
        %v920 = vpop.xlane.xlu0 %919
        %v921 = vsel %vm869, %v825, -inf
        %922 = vmax.xlane.f32.xlu0 %v921
        %v923 = vpop.xlane.xlu0 %922
        %v924 = vsel %vm869, %v828, -inf
        %925 = vmax.xlane.f32.xlu0 %v924
        %v926 = vpop.xlane.xlu0 %925
        %v927 = vsel %vm869, %v831, -inf
        %928 = vmax.xlane.f32.xlu0 %v927
        %v929 = vpop.xlane.xlu0 %928
        %v930 = vsel %vm869, %v834, -inf
        %931 = vmax.xlane.f32.xlu0 %v930
        %v932 = vpop.xlane.xlu0 %931
        %v933 = vsel %vm869, %v837, -inf
        %934 = vmax.xlane.f32.xlu0 %v933
        %v935 = vpop.xlane.xlu0 %934
        %v936 = vsel %vm869, %v840, -inf
        %937 = vmax.xlane.f32.xlu0 %v936
        %v938 = vpop.xlane.xlu0 %937
        %v939 = vsel %vm869, %v843, -inf
        %940 = vmax.xlane.f32.xlu0 %v939
        %v941 = vpop.xlane.xlu0 %940
        %v942 = vsel %vm869, %v846, -inf
        %943 = vmax.xlane.f32.xlu0 %v942
        %v944 = vpop.xlane.xlu0 %943
        %v945 = vsel %vm869, %v849, -inf
        %946 = vmax.xlane.f32.xlu0 %v945
        %v947 = vpop.xlane.xlu0 %946
        %v948 = vsel %vm869, %v852, -inf
        %949 = vmax.xlane.f32.xlu0 %v948
        %v950 = vpop.xlane.xlu0 %949
        %v951 = vsel %vm869, %v855, -inf
        %952 = vmax.xlane.f32.xlu0 %v951
        %v953 = vpop.xlane.xlu0 %952
        %v954 = vsel %vm869, %v858, -inf
        %955 = vmax.xlane.f32.xlu0 %v954
        %v956 = vpop.xlane.xlu0 %955
        %v957 = vsel %vm869, %v861, -inf
        %958 = vmax.xlane.f32.xlu0 %v957
        %v959 = vpop.xlane.xlu0 %958
        %v960 = vsel %vm869, %v864, -inf
        %961 = vmax.xlane.f32.xlu0 %v960
        %v962 = vpop.xlane.xlu0 %961
        %v963 = vsel %vm869, %v867, -inf
        %964 = vmax.xlane.f32.xlu0 %v963
        %v965 = vpop.xlane.xlu0 %964
        %v966 = vsub.f32 %v774, %v872
        %v967 = vsub.f32 %v777, %v875
        %v968 = vsub.f32 %v780, %v878
        %v969 = vsub.f32 %v783, %v881
        %v970 = vsub.f32 %v786, %v884
        %v971 = vsub.f32 %v789, %v887
        %v972 = vsub.f32 %v792, %v890
        %v973 = vsub.f32 %v795, %v893
        %v974 = vsub.f32 %v798, %v896
        %v975 = vsub.f32 %v801, %v899
        %v976 = vsub.f32 %v804, %v902
        %v977 = vsub.f32 %v807, %v905
        %v978 = vsub.f32 %v810, %v908
        %v979 = vsub.f32 %v813, %v911
        %v980 = vsub.f32 %v816, %v914
        %v981 = vsub.f32 %v819, %v917
        %v982 = vsub.f32 %v822, %v920
        %v983 = vsub.f32 %v825, %v923
        %v984 = vsub.f32 %v828, %v926
        %v985 = vsub.f32 %v831, %v929
        %v986 = vsub.f32 %v834, %v932
        %v987 = vsub.f32 %v837, %v935
        %v988 = vsub.f32 %v840, %v938
        %v989 = vsub.f32 %v843, %v941
        %v990 = vsub.f32 %v846, %v944
        %v991 = vsub.f32 %v849, %v947
        %v992 = vsub.f32 %v852, %v950
        %v993 = vsub.f32 %v855, %v953
        %v994 = vsub.f32 %v858, %v956
        %v995 = vsub.f32 %v861, %v959
        %v996 = vsub.f32 %v864, %v962
        %v997 = vsub.f32 %v867, %v965
        %v998 = vmul.f32 %v966, 1.442695
        %v999 = vpow.pop %v998
        %v1000 = vmul.f32 %v967, 1.442695
        %v1001 = vpow.pop %v1000
        %v1002 = vmul.f32 %v968, 1.442695
        %v1003 = vpow.pop %v1002
        %v1004 = vmul.f32 %v969, 1.442695
        %v1005 = vpow.pop %v1004
        %v1006 = vmul.f32 %v970, 1.442695
        %v1007 = vpow.pop %v1006
        %v1008 = vmul.f32 %v971, 1.442695
        %v1009 = vpow.pop %v1008
        %v1010 = vmul.f32 %v972, 1.442695
        %v1011 = vpow.pop %v1010
        %v1012 = vmul.f32 %v973, 1.442695
        %v1013 = vpow.pop %v1012
        %v1014 = vmul.f32 %v974, 1.442695
        %v1015 = vpow.pop %v1014
        %v1016 = vmul.f32 %v975, 1.442695
        %v1017 = vpow.pop %v1016
        %v1018 = vmul.f32 %v976, 1.442695
        %v1019 = vpow.pop %v1018
        %v1020 = vmul.f32 %v977, 1.442695
        %v1021 = vpow.pop %v1020
        %v1022 = vmul.f32 %v978, 1.442695
        %v1023 = vpow.pop %v1022
        %v1024 = vmul.f32 %v979, 1.442695
        %v1025 = vpow.pop %v1024
        %v1026 = vmul.f32 %v980, 1.442695
        %v1027 = vpow.pop %v1026
        %v1028 = vmul.f32 %v981, 1.442695
        %v1029 = vpow.pop %v1028
        %v1030 = vmul.f32 %v982, 1.442695
        %v1031 = vpow.pop %v1030
        %v1032 = vmul.f32 %v983, 1.442695
        %v1033 = vpow.pop %v1032
        %v1034 = vmul.f32 %v984, 1.442695
        %v1035 = vpow.pop %v1034
        %v1036 = vmul.f32 %v985, 1.442695
        %v1037 = vpow.pop %v1036
        %v1038 = vmul.f32 %v986, 1.442695
        %v1039 = vpow.pop %v1038
        %v1040 = vmul.f32 %v987, 1.442695
        %v1041 = vpow.pop %v1040
        %v1042 = vmul.f32 %v988, 1.442695
        %v1043 = vpow.pop %v1042
        %v1044 = vmul.f32 %v989, 1.442695
        %v1045 = vpow.pop %v1044
        %v1046 = vmul.f32 %v990, 1.442695
        %v1047 = vpow.pop %v1046
        %v1048 = vmul.f32 %v991, 1.442695
        %v1049 = vpow.pop %v1048
        %v1050 = vmul.f32 %v992, 1.442695
        %v1051 = vpow.pop %v1050
        %v1052 = vmul.f32 %v993, 1.442695
        %v1053 = vpow.pop %v1052
        %v1054 = vmul.f32 %v994, 1.442695
        %v1055 = vpow.pop %v1054
        %v1056 = vmul.f32 %v995, 1.442695
        %v1057 = vpow.pop %v1056
        %v1058 = vmul.f32 %v996, 1.442695
        %v1059 = vpow.pop %v1058
        %v1060 = vmul.f32 %v997, 1.442695
        %v1061 = vpow.pop %v1060
        %v1063 = vsel %vm869, 1.0, 0
        %v1066 = vsel %vm869, %v999, 0
        %v1069 = vsel %vm869, %v1001, 0
        %v1072 = vsel %vm869, %v1003, 0
        %v1075 = vsel %vm869, %v1005, 0
        %v1078 = vsel %vm869, %v1007, 0
        %v1081 = vsel %vm869, %v1009, 0
        %v1084 = vsel %vm869, %v1011, 0
        %v1087 = vsel %vm869, %v1013, 0
        %v1090 = vsel %vm869, %v1015, 0
        %v1093 = vsel %vm869, %v1017, 0
        %v1096 = vsel %vm869, %v1019, 0
        %v1099 = vsel %vm869, %v1021, 0
        %v1102 = vsel %vm869, %v1023, 0
        %v1105 = vsel %vm869, %v1025, 0
        %v1108 = vsel %vm869, %v1027, 0
        %v1111 = vsel %vm869, %v1029, 0
        %v1114 = vsel %vm869, %v1031, 0
        %v1117 = vsel %vm869, %v1033, 0
        %v1120 = vsel %vm869, %v1035, 0
        %v1123 = vsel %vm869, %v1037, 0
        %v1126 = vsel %vm869, %v1039, 0
        %v1129 = vsel %vm869, %v1041, 0
        %v1132 = vsel %vm869, %v1043, 0
        %v1135 = vsel %vm869, %v1045, 0
        %v1138 = vsel %vm869, %v1047, 0
        %v1141 = vsel %vm869, %v1049, 0
        %v1144 = vsel %vm869, %v1051, 0
        %v1147 = vsel %vm869, %v1053, 0
        %v1150 = vsel %vm869, %v1055, 0
        %v1153 = vsel %vm869, %v1057, 0
        %v1156 = vsel %vm869, %v1059, 0
        %v1159 = vsel %vm869, %v1061, 0
        %1161 = vmatpush.xpose.msra.mxu0 %v1111
        %1162 = vmatpush.xpose.msra.mxu0 %v1108
        %1163 = vmatpush.xpose.msra.mxu0 %v1105
        %1164 = vmatpush.xpose.msra.mxu0 %v1102
        %1165 = vmatpush.xpose.msra.mxu0 %v1099
        %1166 = vmatpush.xpose.msra.mxu0 %v1096
        %1167 = vmatpush.xpose.msra.mxu0 %v1093
        %1168 = vmatpush.xpose.msra.mxu0 %v1090
        %1169 = vmatpush.xpose.msra.mxu0 %v1087
        %1170 = vmatpush.xpose.msra.mxu0 %v1084
        %1171 = vmatpush.xpose.msra.mxu0 %v1081
        %1172 = vmatpush.xpose.msra.mxu0 %v1078
        %1173 = vmatpush.xpose.msra.mxu0 %v1075
        %1174 = vmatpush.xpose.msra.mxu0 %v1072
        %1175 = vmatpush.xpose.msra.mxu0 %v1069
        %1176 = vmatpush.xpose.msra.mxu0 %v1066
        %1177 = vmatmul.f32.gmra.mxu0 %v1063
        %v1178 = vpop.f32.mrf.mxu0
        %v1179 = vadd.f32 0.0, %v1178
        %1180 = vdwg.mxu0
        %1181 = vmatpush.xpose.msra.mxu0 %v1159
        %1182 = vmatpush.xpose.msra.mxu0 %v1156
        %1183 = vmatpush.xpose.msra.mxu0 %v1153
        %1184 = vmatpush.xpose.msra.mxu0 %v1150
        %1185 = vmatpush.xpose.msra.mxu0 %v1147
        %1186 = vmatpush.xpose.msra.mxu0 %v1144
        %1187 = vmatpush.xpose.msra.mxu0 %v1141
        %1188 = vmatpush.xpose.msra.mxu0 %v1138
        %1189 = vmatpush.xpose.msra.mxu0 %v1135
        %1190 = vmatpush.xpose.msra.mxu0 %v1132
        %1191 = vmatpush.xpose.msra.mxu0 %v1129
        %1192 = vmatpush.xpose.msra.mxu0 %v1126
        %1193 = vmatpush.xpose.msra.mxu0 %v1123
        %1194 = vmatpush.xpose.msra.mxu0 %v1120
        %1195 = vmatpush.xpose.msra.mxu0 %v1117
        %1196 = vmatpush.xpose.msra.mxu0 %v1114
        %1197 = vmatmul.f32.gmra.mxu0 %v1063
        %v1198 = vpop.f32.mrf.mxu0
        %v1199 = vadd.f32 0.0, %v1198
        %1200 = vdwg.mxu0
        %v1201 = vrcp.pop %v1179
        %v1202 = vrcp.pop %v1199
        %v1204 = vsel %vm869, %v591, 0
        %v1207 = vsel %vm869, %v592, 0
        %v1210 = vsel %vm869, %v593, 0
        %v1213 = vsel %vm869, %v594, 0
        %1215 = vmatpush.xpose.msra.mxu0 %v1111
        %1216 = vmatpush.xpose.msra.mxu0 %v1108
        %1217 = vmatpush.xpose.msra.mxu0 %v1105
        %1218 = vmatpush.xpose.msra.mxu0 %v1102
        %1219 = vmatpush.xpose.msra.mxu0 %v1099
        %1220 = vmatpush.xpose.msra.mxu0 %v1096
        %1221 = vmatpush.xpose.msra.mxu0 %v1093
        %1222 = vmatpush.xpose.msra.mxu0 %v1090
        %1223 = vmatpush.xpose.msra.mxu0 %v1087
        %1224 = vmatpush.xpose.msra.mxu0 %v1084
        %1225 = vmatpush.xpose.msra.mxu0 %v1081
        %1226 = vmatpush.xpose.msra.mxu0 %v1078
        %1227 = vmatpush.xpose.msra.mxu0 %v1075
        %1228 = vmatpush.xpose.msra.mxu0 %v1072
        %1229 = vmatpush.xpose.msra.mxu0 %v1069
        %1230 = vmatpush.xpose.msra.mxu0 %v1066
        %1231 = vmatmul.f32.gmra.mxu0 %v1204
        %v1232 = vpop.f32.mrf.mxu0
        %v1233 = vadd.f32 0.0, %v1232
        %1234 = vmatmul.f32.gmra.mxu0 %v1207
        %v1235 = vpop.f32.mrf.mxu0
        %v1236 = vadd.f32 0.0, %v1235
        %1237 = vmatmul.f32.gmra.mxu0 %v1210
        %v1238 = vpop.f32.mrf.mxu0
        %v1239 = vadd.f32 0.0, %v1238
        %1240 = vmatmul.f32.gmra.mxu0 %v1213
        %v1241 = vpop.f32.mrf.mxu0
        %v1242 = vadd.f32 0.0, %v1241
        %1243 = vdwg.mxu0
        %1244 = vmatpush.xpose.msra.mxu0 %v1159
        %1245 = vmatpush.xpose.msra.mxu0 %v1156
        %1246 = vmatpush.xpose.msra.mxu0 %v1153
        %1247 = vmatpush.xpose.msra.mxu0 %v1150
        %1248 = vmatpush.xpose.msra.mxu0 %v1147
        %1249 = vmatpush.xpose.msra.mxu0 %v1144
        %1250 = vmatpush.xpose.msra.mxu0 %v1141
        %1251 = vmatpush.xpose.msra.mxu0 %v1138
        %1252 = vmatpush.xpose.msra.mxu0 %v1135
        %1253 = vmatpush.xpose.msra.mxu0 %v1132
        %1254 = vmatpush.xpose.msra.mxu0 %v1129
        %1255 = vmatpush.xpose.msra.mxu0 %v1126
        %1256 = vmatpush.xpose.msra.mxu0 %v1123
        %1257 = vmatpush.xpose.msra.mxu0 %v1120
        %1258 = vmatpush.xpose.msra.mxu0 %v1117
        %1259 = vmatpush.xpose.msra.mxu0 %v1114
        %1260 = vmatmul.f32.gmra.mxu0 %v1204
        %v1261 = vpop.f32.mrf.mxu0
        %v1262 = vadd.f32 0.0, %v1261
        %1263 = vmatmul.f32.gmra.mxu0 %v1207
        %v1264 = vpop.f32.mrf.mxu0
        %v1265 = vadd.f32 0.0, %v1264
        %1266 = vmatmul.f32.gmra.mxu0 %v1210
        %v1267 = vpop.f32.mrf.mxu0
        %v1268 = vadd.f32 0.0, %v1267
        %1269 = vmatmul.f32.gmra.mxu0 %v1213
        %v1270 = vpop.f32.mrf.mxu0
        %v1271 = vadd.f32 0.0, %v1270
        %1272 = vdwg.mxu0
        %v1273 = vld [vmem:[%s3] sm:$0xf]
        %v1275 = vsel %vm659, %v1273, 0
        %1277 = vmatpush.msra.mxu0 0.0
        %1278 = vmatpush.msra.mxu0 0.0
        %1279 = vmatpush.msra.mxu0 0.0
        %1280 = vmatpush.msra.mxu0 0.0
        %1281 = vmatpush.msra.mxu0 0.0
        %1282 = vmatpush.msra.mxu0 0.0
        %1283 = vmatpush.msra.mxu0 0.0
        %1284 = vmatpush.msra.mxu0 0.0
        %1285 = vmatpush.msra.mxu0 0.0
        %1286 = vmatpush.msra.mxu0 0.0
        %1287 = vmatpush.msra.mxu0 0.0
        %1288 = vmatpush.msra.mxu0 0.0
        %1289 = vmatpush.msra.mxu0 %v1242
        %1290 = vmatpush.msra.mxu0 %v1239
        %1291 = vmatpush.msra.mxu0 %v1236
        %1292 = vmatpush.msra.mxu0 %v1233
        %1293 = vmatmul.f32.gmra.mxu0 %v1275
        %v1294 = vpop.f32.mrf.mxu0
        %v1295 = vadd.f32 0.0, %v1294
        %1296 = vdwg.mxu0
        %1297 = vmatpush.msra.mxu0 0.0
        %1298 = vmatpush.msra.mxu0 0.0
        %1299 = vmatpush.msra.mxu0 0.0
        %1300 = vmatpush.msra.mxu0 0.0
        %1301 = vmatpush.msra.mxu0 0.0
        %1302 = vmatpush.msra.mxu0 0.0
        %1303 = vmatpush.msra.mxu0 0.0
        %1304 = vmatpush.msra.mxu0 0.0
        %1305 = vmatpush.msra.mxu0 0.0
        %1306 = vmatpush.msra.mxu0 0.0
        %1307 = vmatpush.msra.mxu0 0.0
        %1308 = vmatpush.msra.mxu0 0.0
        %1309 = vmatpush.msra.mxu0 %v1271
        %1310 = vmatpush.msra.mxu0 %v1268
        %1311 = vmatpush.msra.mxu0 %v1265
        %1312 = vmatpush.msra.mxu0 %v1262
        %1313 = vmatmul.f32.gmra.mxu0 %v1275
        %v1314 = vpop.f32.mrf.mxu0
        %v1315 = vadd.f32 0.0, %v1314
        %1316 = vdwg.mxu0
        %v1317 = vperm.slane %v1201, 0
        %v1318 = vperm.slane %v1202, 0
        %v1319 = vmul.f32 %v1295, %v1317
        %v1320 = vmul.f32 %v1315, %v1318
        %1322 = vset.pattern.permute.xlu0 0
        %1323 = vperm.xlu0 %1322, %v578
        %v1324 = vpop.permute.xlu0 %1323
        %v1326 = vadd.f32 %v1319, %v1324
        %v1327 = vadd.f32 %v1320, %v1324
        %v1330 = vrot.slane %v1327, 4
        %vm1331 = vcmask 1043456
        %v1332 = vsel %vm1331, %v1326, %v1330
        %1334 = vst [vmem:[%s244] sm:$0xff] %v1332
        %s1335 = sand.u32 %s156, 1
        %s1336 = scalar_lea.sflag [#allocation6], %s1335
        %s1337 = sand.u32 %s156, 1
        %s1338 = smul.addr %s1337, 8
        %s1339 = scalar_lea.vmem [#allocation5], %s1338
        // Predicated region
        $region45: #{tpu_custom_call.1} parent=39 // pred_check
          %p1340 = pneg %p166
        $region46: #{tpu_custom_call.1} parent=39 // pred_check_branch
          %1342 = sbr.rel (%p1340) target = $region48
        $region47: #{tpu_custom_call.1} parent=39 // pred_region
          %s1343 = smul.u32 2, %s24
          %1345 = vsyncadd %s1336, 0
          %s1346 = smul.addr %s23, 2
          %s1347 = sadd.s32 %s1343, %s1346
          %s1348 = smul.addr %s1347, 4
          %s1349 = scalar_lea.hbm %s5, %s1348
          %s1351 = sshll.u32 %s1339, 4
          %s1352 = int_to_ptr.vmem [resolvable:$true] %s1351
          %s1353 = sshll.u32 %s1349, 4
          %s1354 = int_to_ptr.hbm [resolvable:$true] %s1353
          %1356 = dma.vmem_to_hbm [thread:$0]  %s1352, 128, %s1354, %s1336
        $region48: #{tpu_custom_call.1} parent=39 // pred_fallthru
          _
      $region40: #{tpu_custom_call.1} parent=5 // pred_fallthru
        _
      %p1357 = scmp.le.s32.totalorder 2, %s14
      // Predicated region
      $region49: #{tpu_custom_call.1} parent=5 // pred_check
        %p1358 = pneg %p1357
      $region50: #{tpu_custom_call.1} parent=5 // pred_check_branch
        %1360 = sbr.rel (%p1358) target = $region52
      $region51: #{tpu_custom_call.1} parent=5 // pred_region
        %s1361 = ssub.s32 %s14, 2
        // Predicated region
        $region53: #{tpu_custom_call.1} parent=51 // pred_check
          %p1362 = pneg %p172
        $region54: #{tpu_custom_call.1} parent=51 // pred_check_branch
          %1364 = sbr.rel (%p1362) target = $region56
        $region55: #{tpu_custom_call.1} parent=51 // pred_region
          %s1365 = sand.u32 %s157, 1
          %s1366 = scalar_lea.sflag [#allocation6], %s1365
          %s1367 = sand.u32 %s157, 1
          %s1368 = smul.addr %s1367, 8
          %s1369 = scalar_lea.vmem [#allocation5], %s1368
          %1371 = dma.done %s1366, 128
        $region56: #{tpu_custom_call.1} parent=51 // pred_fallthru
          _
      $region52: #{tpu_custom_call.1} parent=5 // pred_fallthru
        _
    $region6: #{tpu_custom_call.1} parent=1 // loop_footer
      %s18 = sadd.s32 1, %s14
    $region7: #{tpu_custom_call.1} parent=1 // loop_footer_branch
      %13 = sbr.rel target = $region3
    $region8: #{tpu_custom_call.1} parent=1 // loop_exit
      _
    %1372 = vsyncpa [#allocation6], 1
    %s1373 = scalar_lea.sflag [#allocation6], 1
    %1374 = vsyncpa %s1373, 1

</llo_original>
